<compile_context>
chip_gen: v6e
topology: v6e:2x2x1
jax: 0.10.0
libtpu: 0.0.40
codegen_flags: <defaults>
</compile_context>

<pallas_src>
import jax
import jax.numpy as jnp
from jax.experimental import pallas as pl
from jax.experimental.pallas import tpu as pltpu

INPUT_SIZE = 10
HIDDEN_SIZE = 64
OUTPUT_SIZE = 2

HIDDEN_PAD = 128   # lane-full hidden dimension (zero-padded weights/bias)


def _round_up(n, m):
    return ((n + m - 1) // m) * m


def mlp_kernel(x_ref, w1_ref, b1_ref, w2_ref, b2_ref, o_ref):
    # fc1: (tm, in) @ (in, HIDDEN_PAD), bf16 operands, f32 accumulate.
    h = jnp.dot(x_ref[...].astype(jnp.bfloat16), w1_ref[...],
                preferred_element_type=jnp.float32)
    # Bias + ReLU in f32 on full 128 lanes (padding columns stay exactly 0).
    h = jnp.maximum(h + b1_ref[...], 0.0)
    # fc2: (tm, HIDDEN_PAD) @ (HIDDEN_PAD, OUTPUT_SIZE), bf16 operands.
    y = jnp.dot(h.astype(jnp.bfloat16), w2_ref[...],
                preferred_element_type=jnp.float32)
    o_ref[...] = (y + b2_ref[...]).astype(o_ref.dtype)


def neural_net_forward(x, padded_params, *, block_rows=4096):
    """x: (B, INPUT_SIZE) f32. padded_params: output of pad_params()."""
    w1p, b1p, w2p, b2p = padded_params
    B = x.shape[0]

    # Batch tile: multiple of 8 sublanes, capped at block_rows, and capped at
    # ~B/2 so large batches always produce >= 2 grid steps (v7x megacore).
    block_rows = _round_up(max(block_rows, 8), 8)
    half = max(8, _round_up(pl.cdiv(B, 2), 8))
    tm = min(block_rows, half)
    grid = (pl.cdiv(B, tm),)   # partial last block handled by Pallas

    # Streamed VMEM footprint (x + out tiles, double-buffered, conservatively
    # assuming lane padding to 128). Only set an explicit limit when it would
    # exceed v5e's 16 MiB default scoped VMEM.
    streamed = 2 * 2 * tm * 128 * 4
    weights = (INPUT_SIZE * HIDDEN_PAD + HIDDEN_PAD * OUTPUT_SIZE) * 2 \
        + (HIDDEN_PAD + OUTPUT_SIZE) * 4
    vmem_limit = None
    if streamed + weights > (16 << 20):
        vmem_limit = min(streamed + weights + (4 << 20), 64 << 20)

    out = pl.pallas_call(
        mlp_kernel,
        out_shape=jax.ShapeDtypeStruct((B, OUTPUT_SIZE), jnp.float32),
        grid=grid,
        in_specs=[
            pl.BlockSpec((tm, INPUT_SIZE), lambda i: (i, 0)),            # streams
            pl.BlockSpec((INPUT_SIZE, HIDDEN_PAD), lambda i: (0, 0)),    # resident
            pl.BlockSpec((1, HIDDEN_PAD), lambda i: (0, 0)),             # resident
            pl.BlockSpec((HIDDEN_PAD, OUTPUT_SIZE), lambda i: (0, 0)),   # resident
            pl.BlockSpec((1, OUTPUT_SIZE), lambda i: (0, 0)),            # resident
        ],
        out_specs=pl.BlockSpec((tm, OUTPUT_SIZE), lambda i: (i, 0)),
        compiler_params=pltpu.CompilerParams(
            dimension_semantics=("parallel",),
            vmem_limit_bytes=vmem_limit),
    )(x, w1p, b1p, w2p, b2p)
    return out


def init_params(key):
    # Deterministic init mimicking nn.Linear's U(-1/sqrt(fan_in), 1/sqrt(fan_in)).
    # Stored as (in_features, out_features) so the kernel computes x @ W + b.
    k1, k2, k3, k4 = jax.random.split(key, 4)
    bound1 = 1.0 / jnp.sqrt(INPUT_SIZE)
    bound2 = 1.0 / jnp.sqrt(HIDDEN_SIZE)
    w1 = jax.random.uniform(k1, (INPUT_SIZE, HIDDEN_SIZE), jnp.float32,
                            minval=-bound1, maxval=bound1)
    b1 = jax.random.uniform(k2, (1, HIDDEN_SIZE), jnp.float32,
                            minval=-bound1, maxval=bound1)
    w2 = jax.random.uniform(k3, (HIDDEN_SIZE, OUTPUT_SIZE), jnp.float32,
                            minval=-bound2, maxval=bound2)
    b2 = jax.random.uniform(k4, (1, OUTPUT_SIZE), jnp.float32,
                            minval=-bound2, maxval=bound2)
    return w1, b1, w2, b2


def pad_params(w1, b1, w2, b2):
    """One-time padding: hidden dim zero-padded to 128; matmul weights in bf16,
    biases in f32 (elementwise math stays f32 on all TPU generations)."""
    w1p = jnp.zeros((INPUT_SIZE, HIDDEN_PAD), jnp.float32)\
        .at[:, :HIDDEN_SIZE].set(w1).astype(jnp.bfloat16)
    b1p = jnp.zeros((1, HIDDEN_PAD), jnp.float32).at[:, :HIDDEN_SIZE].set(b1)
    w2p = jnp.zeros((HIDDEN_PAD, OUTPUT_SIZE), jnp.float32)\
        .at[:HIDDEN_SIZE, :].set(w2).astype(jnp.bfloat16)
    b2p = b2.astype(jnp.float32)
    return w1p, b1p, w2p, b2p


if __name__ == "__main__":
    key = jax.random.PRNGKey(0)
    kx, kx2, kp = jax.random.split(key, 3)

    w1, b1, w2, b2 = init_params(kp)
    padded = pad_params(w1, b1, w2, b2)

    def ref_forward(x):
        return jnp.maximum(x @ w1 + b1, 0.0) @ w2 + b2

    # bf16 matmul operands (f32 accumulate) => loosened tolerance vs f32 ref.
    TOL = dict(atol=5e-2, rtol=5e-2)

    # Case 1: small batch (single grid step, single tile).
    batch = 8
    x = jax.random.normal(kx, (batch, INPUT_SIZE), jnp.float32)
    out = neural_net_forward(x, padded)
    jax.block_until_ready(out)
    assert out.shape == (batch, OUTPUT_SIZE)
    assert jnp.allclose(out, ref_forward(x), **TOL)

    # Case 2: non-multiple-of-tile batch exercising the batch grid and the
    # partial last block (no pre-padding of x).
    batch2 = 200
    x2 = jax.random.normal(kx2, (batch2, INPUT_SIZE), jnp.float32)
    out2 = neural_net_forward(x2, padded, block_rows=64)
    jax.block_until_ready(out2)
    assert out2.shape == (batch2, OUTPUT_SIZE)
    assert jnp.allclose(out2, ref_forward(x2), **TOL)

    print("KERNEL_OK")
</pallas_src>

<mosaic_0001>
module attributes {stable_mosaic.version = 11 : i64} {
  func.func @mlp_kernel(%arg0: i32, %arg1: memref<8x10xf32, #tpu.memory_space<vmem>>, %arg2: memref<10x128xbf16, #tpu.memory_space<vmem>>, %arg3: memref<1x128xf32, #tpu.memory_space<vmem>>, %arg4: memref<128x2xbf16, #tpu.memory_space<vmem>>, %arg5: memref<1x2xf32, #tpu.memory_space<vmem>>, %arg6: memref<8x2xf32, #tpu.memory_space<vmem>>) attributes {dimension_semantics = [#tpu.dimension_semantics<parallel>], iteration_bounds = array<i64: 1>, scalar_prefetch = 0 : i64, scratch_operands = 0 : i64, tpu.core_type = #tpu.core_type<tc>, window_params = [{transform_indices = @transform_0, window_bounds = array<i64: 8, 10>}, {pipeline_mode = #tpu.pipeline_mode<synchronous>, transform_indices = @transform_1, window_bounds = array<i64: 10, 128>}, {pipeline_mode = #tpu.pipeline_mode<synchronous>, transform_indices = @transform_2, window_bounds = array<i64: 1, 128>}, {pipeline_mode = #tpu.pipeline_mode<synchronous>, transform_indices = @transform_3, window_bounds = array<i64: 128, 2>}, {pipeline_mode = #tpu.pipeline_mode<synchronous>, transform_indices = @transform_4, window_bounds = array<i64: 1, 2>}, {transform_indices = @transform_5, window_bounds = array<i64: 8, 2>}]} {
    %c0 = arith.constant 0 : index
    %c0_0 = arith.constant 0 : index
    %0 = vector.load %arg1[%c0, %c0_0] : memref<8x10xf32, #tpu.memory_space<vmem>>, vector<8x10xf32>
    %1 = arith.truncf %0 : vector<8x10xf32> to vector<8x10xbf16>
    %c0_1 = arith.constant 0 : index
    %c0_2 = arith.constant 0 : index
    %2 = vector.load %arg2[%c0_1, %c0_2] : memref<10x128xbf16, #tpu.memory_space<vmem>>, vector<10x128xbf16>
    %cst = arith.constant dense<0.000000e+00> : vector<8x128xf32>
    %3 = tpu.matmul %1, %2, %cst {dimension_numbers = #tpu.dot_dimension_numbers<[1], [0], [0], [1], [0, 0, 1, 1], [], []>} : vector<8x10xbf16>, vector<10x128xbf16>, vector<8x128xf32> -> vector<8x128xf32>
    %c0_3 = arith.constant 0 : index
    %c0_4 = arith.constant 0 : index
    %4 = vector.load %arg3[%c0_3, %c0_4] : memref<1x128xf32, #tpu.memory_space<vmem>>, vector<1x128xf32>
    %5 = vector.broadcast %4 : vector<1x128xf32> to vector<8x128xf32>
    %6 = arith.addf %3, %5 : vector<8x128xf32>
    %cst_5 = arith.constant 0.000000e+00 : f32
    %7 = vector.broadcast %cst_5 : f32 to vector<8x128xf32>
    %8 = arith.maximumf %6, %7 : vector<8x128xf32>
    %9 = arith.truncf %8 : vector<8x128xf32> to vector<8x128xbf16>
    %c0_6 = arith.constant 0 : index
    %c0_7 = arith.constant 0 : index
    %10 = vector.load %arg4[%c0_6, %c0_7] : memref<128x2xbf16, #tpu.memory_space<vmem>>, vector<128x2xbf16>
    %cst_8 = arith.constant dense<0.000000e+00> : vector<8x2xf32>
    %11 = tpu.matmul %9, %10, %cst_8 {dimension_numbers = #tpu.dot_dimension_numbers<[1], [0], [0], [1], [0, 0, 1, 1], [], []>} : vector<8x128xbf16>, vector<128x2xbf16>, vector<8x2xf32> -> vector<8x2xf32>
    %c0_9 = arith.constant 0 : index
    %c0_10 = arith.constant 0 : index
    %12 = vector.load %arg5[%c0_9, %c0_10] : memref<1x2xf32, #tpu.memory_space<vmem>>, vector<1x2xf32>
    %13 = vector.broadcast %12 : vector<1x2xf32> to vector<8x2xf32>
    %14 = arith.addf %11, %13 : vector<8x2xf32>
    %c0_11 = arith.constant 0 : index
    %c0_12 = arith.constant 0 : index
    %15 = vector.load %arg6[%c0_11, %c0_12] : memref<8x2xf32, #tpu.memory_space<vmem>>, vector<8x2xf32>
    tpu.vector_store %arg6[%c0_11, %c0_12], %14 {strides = array<i32>} : memref<8x2xf32, #tpu.memory_space<vmem>>, vector<8x2xf32>,
    return
  }
  func.func @transform_0(%arg0: i32) -> (i32, i32) {
    %c0_i32 = arith.constant 0 : i32
    %c0_i32_0 = arith.constant 0 : i32
    return %arg0, %c0_i32 : i32, i32
  }
  func.func @transform_1(%arg0: i32) -> (i32, i32) {
    %c0_i32 = arith.constant 0 : i32
    %c0_i32_0 = arith.constant 0 : i32
    %c0_i32_1 = arith.constant 0 : i32
    return %c0_i32, %c0_i32_0 : i32, i32
  }
  func.func @transform_2(%arg0: i32) -> (i32, i32) {
    %c0_i32 = arith.constant 0 : i32
    %c0_i32_0 = arith.constant 0 : i32
    %c0_i32_1 = arith.constant 0 : i32
    return %c0_i32, %c0_i32_0 : i32, i32
  }
  func.func @transform_3(%arg0: i32) -> (i32, i32) {
    %c0_i32 = arith.constant 0 : i32
    %c0_i32_0 = arith.constant 0 : i32
    %c0_i32_1 = arith.constant 0 : i32
    return %c0_i32, %c0_i32_0 : i32, i32
  }
  func.func @transform_4(%arg0: i32) -> (i32, i32) {
    %c0_i32 = arith.constant 0 : i32
    %c0_i32_0 = arith.constant 0 : i32
    %c0_i32_1 = arith.constant 0 : i32
    return %c0_i32, %c0_i32_0 : i32, i32
  }
  func.func @transform_5(%arg0: i32) -> (i32, i32) {
    %c0_i32 = arith.constant 0 : i32
    %c0_i32_0 = arith.constant 0 : i32
    return %arg0, %c0_i32 : i32, i32
  }
}

</mosaic_0001>

<llo_original>
// kernel: tpu_custom_call.1
$region0: #{tpu_custom_call.1}
  #allocation0 [shape = 'u32[]', space=smem, size = 0x4, offset = 0x4, fixed_abs, tag = 'smem constant byte address 0x4 - core index']
  #allocation1 [shape = 'u32[144,128]{1,0:T(1,128)}', space=vmem, size = 0x12000, scoped, tag = 'internal scratch']
  %s0 = inlined_call_operand.vmem [shape: f32[8,10], index: 0, kind: input, shape index: {}]
  %s1 = inlined_call_operand.vmem [shape: bf16[10,128], index: 1, kind: input, shape index: {}]
  %s2 = inlined_call_operand.vmem [shape: f32[1,128], index: 2, kind: input, shape index: {}]
  %s3 = inlined_call_operand.vmem [shape: bf16[128,2], index: 3, kind: input, shape index: {}]
  %s4 = inlined_call_operand.vmem [shape: f32[1,2], index: 4, kind: input, shape index: {}]
  %s5 = inlined_call_operand.vmem [shape: f32[8,2], index: 5, kind: output, shape index: {}]
  %s6 = sld [smem:[#allocation0]]
  $region30: #{tpu_custom_call.1} parent=0
    _
  %s8 = ssub.s32 1, %s6
  %s9 = scalar_select 0, %s8, %s6
  // Predicated region
  $region2: #{tpu_custom_call.1} parent=0 // pred_check
    _
  $region3: #{tpu_custom_call.1} parent=0 // pred_check_branch
    %11 = sbr.rel (0) target = $region5
  $region4: #{tpu_custom_call.1} parent=0 // pred_region
    _
  $region5: #{tpu_custom_call.1} parent=0 // pred_fallthru
    _
  // Predicated region
  $region6: #{tpu_custom_call.1} parent=0 // pred_check
    _
  $region7: #{tpu_custom_call.1} parent=0 // pred_check_branch
    %13 = sbr.rel (0) target = $region9
  $region8: #{tpu_custom_call.1} parent=0 // pred_region
    _
  $region9: #{tpu_custom_call.1} parent=0 // pred_fallthru
    _
  // Predicated region
  $region10: #{tpu_custom_call.1} parent=0 // pred_check
    _
  $region11: #{tpu_custom_call.1} parent=0 // pred_check_branch
    %15 = sbr.rel (0) target = $region13
  $region12: #{tpu_custom_call.1} parent=0 // pred_region
    _
  $region13: #{tpu_custom_call.1} parent=0 // pred_fallthru
    _
  // Predicated region
  $region14: #{tpu_custom_call.1} parent=0 // pred_check
    _
  $region15: #{tpu_custom_call.1} parent=0 // pred_check_branch
    %17 = sbr.rel (0) target = $region17
  $region16: #{tpu_custom_call.1} parent=0 // pred_region
    _
  $region17: #{tpu_custom_call.1} parent=0 // pred_fallthru
    _
  // Predicated region
  $region18: #{tpu_custom_call.1} parent=0 // pred_check
    _
  $region19: #{tpu_custom_call.1} parent=0 // pred_check_branch
    %19 = sbr.rel (0) target = $region21
  $region20: #{tpu_custom_call.1} parent=0 // pred_region
    _
  $region21: #{tpu_custom_call.1} parent=0 // pred_fallthru
    _
  %v21 = vld [vmem:[%s0] sm:$0xff]
  %v22 = vpack.c.bf16 %v21, %v21
  %v23 = vld [vmem:[%s1] sm:$0xf]
  %v24 = vld [vmem:[%s1 + $0x4] sm:$0x1]
  %v25 = vld [vmem:[%s2] sm:$0x1]
  %v27 = vlaneseq
  %v28 = vshrl.u32 %v27, 7
  %v29 = vsub.s32 0, %v28
  %v30 = vrot.slane %v25, %v29
  %v34 = vunpack.c.l.b16 %v23
  %v35 = vunpack.c.l.b16 %v24
  %v36 = vpack.c.b16 %v35, %v34
  %vm37 = vcmask 80896
  %v39 = vsel %vm37, %v22, 0
  %vm41 = vcmask 1044480
  %v43 = vsel %vm41, %v36, 0
  %45 = vmatprep.subr.bf16.mxu0 0
  %46 = vmatpush1.bf16.msra.mxu0 0
  %47 = vmatprep.subr.bf16.mxu0 0
  %48 = vmatpush1.bf16.msra.mxu0 0
  %49 = vmatprep.subr.bf16.mxu0 0
  %50 = vmatpush1.bf16.msra.mxu0 0
  %51 = vmatprep.subr.bf16.mxu0 0
  %52 = vmatpush1.bf16.msra.mxu0 0
  %53 = vmatprep.subr.bf16.mxu0 0
  %54 = vmatpush1.bf16.msra.mxu0 0
  %55 = vmatprep.subr.bf16.mxu0 0
  %56 = vmatpush1.bf16.msra.mxu0 0
  %57 = vmatprep.subr.bf16.mxu0 0
  %58 = vmatpush1.bf16.msra.mxu0 0
  %59 = vmatprep.subr.bf16.mxu0 0
  %60 = vmatpush1.bf16.msra.mxu0 %v43
  %61 = vmatprep.subr.bf16.mxu0 0
  %62 = vmatpush2.bf16.msra.mxu0 0
  %63 = vmatprep.subr.bf16.mxu0 0
  %64 = vmatpush2.bf16.msra.mxu0 0
  %65 = vmatprep.subr.bf16.mxu0 0
  %66 = vmatpush2.bf16.msra.mxu0 0
  %67 = vmatprep.subr.bf16.mxu0 0
  %68 = vmatpush2.bf16.msra.mxu0 0
  %69 = vmatprep.subr.bf16.mxu0 0
  %70 = vmatpush2.bf16.msra.mxu0 0
  %71 = vmatprep.subr.bf16.mxu0 0
  %72 = vmatpush2.bf16.msra.mxu0 0
  %73 = vmatprep.subr.bf16.mxu0 0
  %74 = vmatpush2.bf16.msra.mxu0 0
  %75 = vmatprep.subr.bf16.mxu0 0
  %76 = vmatpush2.bf16.msra.mxu0 0
  %77 = vmatprep.mubr.bf16.mxu0 0
  %78 = vmatmul.mubr.bf16.gmra.mxu0 %v39
  %v79 = vpop.f32.mrf.mxu0
  %v80 = vadd.f32 %v30, %v79
  %v81 = vpop.f32.mrf.mxu0
  %v82 = vpop.f32.mrf.mxu0
  %v83 = vpop.f32.mrf.mxu0
  %84 = vdwg.mxu0
  %v85 = vmax.f32 %v80, 0.0
  %v86 = vpack.c.bf16 %v85, %v85
  %v87 = vld [vmem:[%s3] sm:$0xf]
  %v88 = vld [vmem:[%s3 + $0x4] sm:$0xf]
  %v89 = vld [vmem:[%s3 + $0x8] sm:$0xf]
  %v90 = vld [vmem:[%s3 + $0xc] sm:$0xf]
  %v91 = vld [vmem:[%s3 + $0x10] sm:$0xf]
  %v92 = vld [vmem:[%s3 + $0x14] sm:$0xf]
  %v93 = vld [vmem:[%s3 + $0x18] sm:$0xf]
  %v94 = vld [vmem:[%s3 + $0x1c] sm:$0xf]
  %v95 = vld [vmem:[%s3 + $0x20] sm:$0xf]
  %v96 = vld [vmem:[%s3 + $0x24] sm:$0xf]
  %v97 = vld [vmem:[%s3 + $0x28] sm:$0xf]
  %v98 = vld [vmem:[%s3 + $0x2c] sm:$0xf]
  %v99 = vld [vmem:[%s3 + $0x30] sm:$0xf]
  %v100 = vld [vmem:[%s3 + $0x34] sm:$0xf]
  %v101 = vld [vmem:[%s3 + $0x38] sm:$0xf]
  %v102 = vld [vmem:[%s3 + $0x3c] sm:$0xf]
  %v103 = vld [vmem:[%s4] sm:$0x1]
  %v105 = vlaneseq
  %v106 = vshrl.u32 %v105, 7
  %v107 = vsub.s32 0, %v106
  %v108 = vrot.slane %v103, %v107
  %v126 = vunpack.c.l.b16 %v87
  %v127 = vunpack.c.l.b16 %v88
  %v128 = vunpack.c.l.b16 %v89
  %v129 = vunpack.c.l.b16 %v90
  %v130 = vunpack.c.l.b16 %v91
  %v131 = vunpack.c.l.b16 %v92
  %v132 = vunpack.c.l.b16 %v93
  %v133 = vunpack.c.l.b16 %v94
  %v134 = vunpack.c.l.b16 %v95
  %v135 = vunpack.c.l.b16 %v96
  %v136 = vunpack.c.l.b16 %v97
  %v137 = vunpack.c.l.b16 %v98
  %v138 = vunpack.c.l.b16 %v99
  %v139 = vunpack.c.l.b16 %v100
  %v140 = vunpack.c.l.b16 %v101
  %v141 = vunpack.c.l.b16 %v102
  %v142 = vpack.c.b16 %v127, %v126
  %v143 = vpack.c.b16 %v129, %v128
  %v144 = vpack.c.b16 %v131, %v130
  %v145 = vpack.c.b16 %v133, %v132
  %v146 = vpack.c.b16 %v135, %v134
  %v147 = vpack.c.b16 %v137, %v136
  %v148 = vpack.c.b16 %v139, %v138
  %v149 = vpack.c.b16 %v141, %v140
  %158 = vmatprep.subr.bf16.mxu0 0
  %159 = vmatpush1.bf16.msra.mxu0 %v149
  %160 = vmatprep.subr.bf16.mxu0 0
  %161 = vmatpush1.bf16.msra.mxu0 %v148
  %162 = vmatprep.subr.bf16.mxu0 0
  %163 = vmatpush1.bf16.msra.mxu0 %v147
  %164 = vmatprep.subr.bf16.mxu0 0
  %165 = vmatpush1.bf16.msra.mxu0 %v146
  %166 = vmatprep.subr.bf16.mxu0 0
  %167 = vmatpush1.bf16.msra.mxu0 %v145
  %168 = vmatprep.subr.bf16.mxu0 0
  %169 = vmatpush1.bf16.msra.mxu0 %v144
  %170 = vmatprep.subr.bf16.mxu0 0
  %171 = vmatpush1.bf16.msra.mxu0 %v143
  %172 = vmatprep.subr.bf16.mxu0 0
  %173 = vmatpush1.bf16.msra.mxu0 %v142
  %174 = vmatprep.subr.bf16.mxu0 0
  %175 = vmatpush2.bf16.msra.mxu0 0
  %176 = vmatprep.subr.bf16.mxu0 0
  %177 = vmatpush2.bf16.msra.mxu0 0
  %178 = vmatprep.subr.bf16.mxu0 0
  %179 = vmatpush2.bf16.msra.mxu0 0
  %180 = vmatprep.subr.bf16.mxu0 0
  %181 = vmatpush2.bf16.msra.mxu0 0
  %182 = vmatprep.subr.bf16.mxu0 0
  %183 = vmatpush2.bf16.msra.mxu0 0
  %184 = vmatprep.subr.bf16.mxu0 0
  %185 = vmatpush2.bf16.msra.mxu0 0
  %186 = vmatprep.subr.bf16.mxu0 0
  %187 = vmatpush2.bf16.msra.mxu0 0
  %188 = vmatprep.subr.bf16.mxu0 0
  %189 = vmatpush2.bf16.msra.mxu0 0
  %190 = vmatprep.mubr.bf16.mxu0 0
  %191 = vmatmul.mubr.bf16.gmra.mxu0 %v86
  %v192 = vpop.f32.mrf.mxu0
  %v193 = vadd.f32 %v108, %v192
  %v194 = vpop.f32.mrf.mxu0
  %v195 = vpop.f32.mrf.mxu0
  %v196 = vpop.f32.mrf.mxu0
  %197 = vdwg.mxu0
  %vm198 = vcmask 15360
  %199 = vst.msk [vmem:[%s5] sm:$0xff] %vm198, %v193
  // Predicated region
  $region22: #{tpu_custom_call.1} parent=0 // pred_check
    _
  $region23: #{tpu_custom_call.1} parent=0 // pred_check_branch
    %201 = sbr.rel (0) target = $region25
  $region24: #{tpu_custom_call.1} parent=0 // pred_region
    _
  $region25: #{tpu_custom_call.1} parent=0 // pred_fallthru
    _
  // Predicated region
  $region26: #{tpu_custom_call.1} parent=0 // pred_check
    _
  $region27: #{tpu_custom_call.1} parent=0 // pred_check_branch
    %203 = sbr.rel (0) target = $region29
  $region28: #{tpu_custom_call.1} parent=0 // pred_region
    _
  $region29: #{tpu_custom_call.1} parent=0 // pred_fallthru
    _

</llo_original>
